<compile_context>
chip_gen: v5e
topology: v5e:2x2
jax: 0.10.0
libtpu: 0.0.40
codegen_flags: <defaults>
</compile_context>

<pallas_src>
import functools

import jax
import jax.numpy as jnp
import numpy as np
from jax.experimental import pallas as pl
from jax.experimental.pallas import tpu as pltpu  # noqa: F401 (TPU backend)

EPS = 1e-5


# --------------------------------------------------------------------------
# Pallas kernel: both branches + logits, fully fused, single invocation
# --------------------------------------------------------------------------
def _adi_fused_kernel(emb_ref, w1_ref, w2_ref, b2_ref, w3_ref, b3_ref,
                      w4_ref, b4_ref, out_ref, *, H0, H1, S):
    outs = []
    for br in range(2):                                   # 0 = user, 1 = item
        emb = emb_ref[br]                                 # [B, L+1] (ones col appended)

        # ---- level-1 fused matmul -------------------------------------
        # output columns: [ expert(H0) | shared_0..S-1 (S*H0) | gate(S) | adi-gate(2) ]
        # biases (+ folded BN shift, + dome@wga) live in the last input row.
        y1 = jnp.dot(emb, w1_ref[br], preferred_element_type=jnp.float32)
        z1 = jnp.maximum(y1[:, :(1 + S) * H0], 0.0)       # [B, (1+S)*H0]
        g_log = y1[:, (1 + S) * H0:(1 + S) * H0 + S]      # [B, S]
        ga_log = y1[:, (1 + S) * H0 + S:(1 + S) * H0 + S + 2]  # [B, 2]

        # ---- level-2 block-diagonal matmul ----------------------------
        y2 = jnp.dot(z1, w2_ref[br], preferred_element_type=jnp.float32) + b2_ref[br]
        z2 = jnp.maximum(y2, 0.0)                         # [B, (1+S)*H1]
        expert = z2[:, :H1]

        # ---- expert gate (softmax over shared experts) ----------------
        if S == 2:
            # softmax over 2 logits == sigmoid of their difference (EUP, no XLU reduce)
            g0 = jax.nn.sigmoid(g_log[:, 0:1] - g_log[:, 1:2])
            gates = [g0, 1.0 - g0]
        else:
            g = jax.nn.softmax(g_log, axis=1)
            gates = [g[:, s:s + 1] for s in range(S)]
        weighted = z2[:, H1:2 * H1] * gates[0]
        for s in range(1, S):
            weighted = weighted + z2[:, (1 + s) * H1:(2 + s) * H1] * gates[s]

        # ---- ADI gate (sigmoid) ---------------------------------------
        ga = jax.nn.sigmoid(ga_log)                       # [B, 2]
        spec = expert * ga[:, 1:2]
        share = weighted * ga[:, 0:1]

        # ---- mlp3 on concat([spec, spec*share, share]) without the concat:
        # w3 pre-split into three row blocks in the wrapper.
        h3 = (jnp.dot(spec, w3_ref[br, 0], preferred_element_type=jnp.float32)
              + jnp.dot(spec * share, w3_ref[br, 1], preferred_element_type=jnp.float32)
              + jnp.dot(share, w3_ref[br, 2], preferred_element_type=jnp.float32)
              + b3_ref[br])
        h3 = jnp.maximum(h3, 0.0)

        # ---- mlp4 (Linear + ReLU) -------------------------------------
        h4 = jnp.dot(h3, w4_ref[br], preferred_element_type=jnp.float32) + b4_ref[br]
        outs.append(jnp.maximum(h4, 0.0))                 # [B, H3]

    # ---- logits: sum(u * i) fused as epilogue (no second launch) -------
    out_ref[...] = jnp.sum(outs[0] * outs[1], axis=1, keepdims=True)


# --------------------------------------------------------------------------
# Parameter initialization (deterministic, synthetic)
# --------------------------------------------------------------------------
def init_params(key, cfg):
    L = cfg['latent_dim']
    H = cfg['hidden_units']
    T = cfg['num_tasks']
    S = cfg['num_shared_experts']
    keys = iter(jax.random.split(key, 128))

    def lin(fan_in, fan_out, *lead):
        bound = 1.0 / (fan_in ** 0.5)
        w = jax.random.uniform(next(keys), (*lead, fan_in, fan_out),
                               minval=-bound, maxval=bound, dtype=jnp.float32)
        b = jax.random.uniform(next(keys), (*lead, fan_out),
                               minval=-bound, maxval=bound, dtype=jnp.float32)
        return w, b

    def bn(feat, *lead):
        gamma = 1.0 + 0.1 * jax.random.normal(next(keys), (*lead, feat), jnp.float32)
        beta = 0.1 * jax.random.normal(next(keys), (*lead, feat), jnp.float32)
        mean = 0.1 * jax.random.normal(next(keys), (*lead, feat), jnp.float32)
        var = 1.0 + 0.1 * jnp.abs(jax.random.normal(next(keys), (*lead, feat), jnp.float32))
        return gamma, beta, mean, var

    def branch():
        p = {}
        p['w1'], p['b1'] = lin(L, H[0], T)           # umlp1 / imlp1 (per task)
        p['bn1'] = bn(H[0], T)
        p['w2'], p['b2'] = lin(H[0], H[1], T)        # umlp2 / imlp2 (per task)
        p['bn2'] = bn(H[1], T)
        p['ws1'], p['bs1'] = lin(L, H[0], S)         # shared experts level 1
        p['ds1'] = bn(H[0], T, S)                    # domain-specific BN 1
        p['ws2'], p['bs2'] = lin(H[0], H[1], S)      # shared experts level 2
        p['ds2'] = bn(H[1], T, S)                    # domain-specific BN 2
        p['wg'], p['bg'] = lin(L, S, T)              # expert gate per task
        p['wga'], p['bga'] = lin(L, 2)               # ADI gate
        p['w3'], p['b3'] = lin(3 * H[1], 3 * H[2], T)
        p['bn3'] = bn(3 * H[2], T)
        p['w4'], p['b4'] = lin(3 * H[2], H[3], T)
        return p

    return {
        'user_emb_table': jax.random.normal(next(keys), (cfg['num_users'], L), jnp.float32),
        'item_emb_table': jax.random.normal(next(keys), (cfg['num_items'], L), jnp.float32),
        'domain_embs': jax.random.normal(next(keys), (2 * T, L), jnp.float32),
        'u': branch(),
        'i': branch(),
    }


# --------------------------------------------------------------------------
# Wrapper-side weight packing (BN fold + matmul fusion).  Depends only on
# (params, domain_idc); precompute / cache it outside the per-batch hot path.
# --------------------------------------------------------------------------
def _bn_fold(gamma, beta, mean, var):
    scale = gamma / jnp.sqrt(var + EPS)
    shift = beta - mean * scale
    return scale, shift


def _fold_linear_bn(w, b, bn, idx):
    gamma, beta, mean, var = (t[idx] for t in bn)
    scale, shift = _bn_fold(gamma, beta, mean, var)
    return w * scale[None, :], b * scale + shift


def _block_diag(blocks):
    rows = sum(b.shape[0] for b in blocks)
    cols = sum(b.shape[1] for b in blocks)
    out = jnp.zeros((rows, cols), blocks[0].dtype)
    r = c = 0
    for blk in blocks:
        out = out.at[r:r + blk.shape[0], c:c + blk.shape[1]].set(blk)
        r += blk.shape[0]
        c += blk.shape[1]
    return out


def _pack_branch(p, dome, d, H, S):
    # ---- level 1: one wide [L+1, (1+S)*H0 + S + 2] weight, bias in last row
    w1, b1 = _fold_linear_bn(p['w1'][d], p['b1'][d], p['bn1'], d)
    ws1, bs1 = [], []
    for s in range(S):
        w, b = _fold_linear_bn(p['ws1'][s], p['bs1'][s], p['ds1'], (d, s))
        ws1.append(w)
        bs1.append(b)
    wga = p['wga']
    bga = p['bga'] + dome @ wga                 # fold (dome @ wga) into the bias
    W1 = jnp.concatenate([w1] + ws1 + [p['wg'][d], wga], axis=1)
    B1 = jnp.concatenate([b1] + bs1 + [p['bg'][d], bga], axis=0)
    W1_aug = jnp.concatenate([W1, B1[None, :]], axis=0)        # [L+1, N1]

    # ---- level 2: block-diagonal [(1+S)*H0, (1+S)*H1]
    w2, b2 = _fold_linear_bn(p['w2'][d], p['b2'][d], p['bn2'], d)
    ws2, bs2 = [w2], [b2]
    for s in range(S):
        w, b = _fold_linear_bn(p['ws2'][s], p['bs2'][s], p['ds2'], (d, s))
        ws2.append(w)
        bs2.append(b)
    W2 = _block_diag(ws2)
    B2 = jnp.concatenate(bs2, axis=0)[None, :]

    # ---- level 3: split w3 rows into the three blocks for spec / spec*share / share
    w3, b3 = _fold_linear_bn(p['w3'][d], p['b3'][d], p['bn3'], d)
    H1 = H[1]
    W3 = jnp.stack([w3[0:H1], w3[H1:2 * H1], w3[2 * H1:3 * H1]], axis=0)  # [3, H1, 3*H2]
    B3 = b3[None, :]

    # ---- level 4
    W4 = p['w4'][d]
    B4 = p['b4'][d][None, :]
    return [W1_aug, W2, B2, W3, B3, W4, B4]


def pack_adi_params(params, domain_idc, cfg):
    d = int(domain_idc)
    T, H, S = cfg['num_tasks'], cfg['hidden_units'], cfg['num_shared_experts']
    u = _pack_branch(params['u'], params['domain_embs'][d], d, H, S)
    i = _pack_branch(params['i'], params['domain_embs'][d + T], d, H, S)
    # Stack user/item on a leading axis of size 2; the kernel statically
    # indexes [0]/[1] inside a single invocation.
    return [jnp.stack([a, b], axis=0) for a, b in zip(u, i)]


# --------------------------------------------------------------------------
# Forward wrapper
# --------------------------------------------------------------------------
def adi_forward_packed(packed, user_emb_table, item_emb_table,
                       user_indices, item_indices, cfg):
    H, S = cfg['hidden_units'], cfg['num_shared_experts']
    u_emb = user_emb_table[user_indices]                   # [B, L]   (glue: gather)
    i_emb = item_emb_table[item_indices]                   # [B, L]
    B = u_emb.shape[0]
    ones = jnp.ones((B, 1), jnp.float32)                   # bias column
    emb = jnp.stack([jnp.concatenate([u_emb, ones], axis=1),
                     jnp.concatenate([i_emb, ones], axis=1)], axis=0)  # [2, B, L+1]

    kernel = functools.partial(_adi_fused_kernel, H0=H[0], H1=H[1], S=S)
    # No grid: everything fits comfortably in VMEM, single launch, whole-array
    # blocks (default specs), logits computed in-kernel.
    logits = pl.pallas_call(
        kernel,
        out_shape=jax.ShapeDtypeStruct((B, 1), jnp.float32),
    )(emb, *packed)
    return logits                                          # eval mode: [B, 1]


def adi_forward(params, user_indices, item_indices, domain_idc, cfg):
    packed = pack_adi_params(params, domain_idc, cfg)      # cacheable per (params, domain)
    return adi_forward_packed(packed, params['user_emb_table'],
                              params['item_emb_table'],
                              user_indices, item_indices, cfg)


# --------------------------------------------------------------------------
# Pure-JAX reference for correctness checking
# --------------------------------------------------------------------------
def adi_forward_ref(params, user_indices, item_indices, domain_idc, cfg):
    d = int(domain_idc)
    T = cfg['num_tasks']
    S = cfg['num_shared_experts']

    def bn_apply(x, bn, idx):
        gamma, beta, mean, var = (t[idx] for t in bn)
        return (x - mean) / jnp.sqrt(var + EPS) * gamma + beta

    def branch(p, emb, dome):
        h = jax.nn.relu(bn_apply(emb @ p['w1'][d] + p['b1'][d], p['bn1'], d))
        expert = jax.nn.relu(bn_apply(h @ p['w2'][d] + p['b2'][d], p['bn2'], d))
        shared = []
        for s in range(S):
            hs = jax.nn.relu(bn_apply(emb @ p['ws1'][s] + p['bs1'][s], p['ds1'], (d, s)))
            hs = jax.nn.relu(bn_apply(hs @ p['ws2'][s] + p['bs2'][s], p['ds2'], (d, s)))
            shared.append(hs)
        g = jax.nn.softmax(emb @ p['wg'][d] + p['bg'][d], axis=1)
        weighted = sum(shared[s] * g[:, s:s + 1] for s in range(S))
        ga = jax.nn.sigmoid((emb + dome) @ p['wga'] + p['bga'])
        spec = expert * ga[:, 1:2]
        share = weighted * ga[:, 0:1]
        adi = jnp.concatenate([spec, spec * share, share], axis=1)
        h3 = jax.nn.relu(bn_apply(adi @ p['w3'][d] + p['b3'][d], p['bn3'], d))
        return jax.nn.relu(h3 @ p['w4'][d] + p['b4'][d])

    u_emb = params['user_emb_table'][user_indices]
    i_emb = params['item_emb_table'][item_indices]
    u = branch(params['u'], u_emb, params['domain_embs'][d])
    i = branch(params['i'], i_emb, params['domain_embs'][d + T])
    return jnp.sum(u * i, axis=1, keepdims=True)


# --------------------------------------------------------------------------
if __name__ == "__main__":
    cfg = dict(
        num_users=50,
        num_items=40,
        latent_dim=32,
        hidden_units=[32, 32, 32, 32],
        num_shared_experts=2,
        num_tasks=2,
        num_negative=3,
        device=None,
        embedding_user=None,
        embedding_item=None,
    )
    key = jax.random.PRNGKey(0)
    pkey, ukey, ikey = jax.random.split(key, 3)
    params = init_params(pkey, cfg)

    B = 8
    user_indices = jax.random.randint(ukey, (B,), 0, cfg['num_users'])
    item_indices = jax.random.randint(ikey, (B,), 0, cfg['num_items'])
    domain_idc = 1

    out = adi_forward(params, user_indices, item_indices, domain_idc, cfg)
    out = jax.block_until_ready(out)
    assert out.shape == (B, 1)

    ref = adi_forward_ref(params, user_indices, item_indices, domain_idc, cfg)
    np.testing.assert_allclose(np.asarray(out), np.asarray(ref), rtol=5e-3, atol=5e-3)

    print("KERNEL_OK")
</pallas_src>

<mosaic_0001>
module attributes {stable_mosaic.version = 11 : i64} {
  func.func @_adi_fused_kernel(%arg0: memref<2x8x33xf32, #tpu.memory_space<vmem>>, %arg1: memref<2x33x100xf32, #tpu.memory_space<vmem>>, %arg2: memref<2x96x96xf32, #tpu.memory_space<vmem>>, %arg3: memref<2x1x96xf32, #tpu.memory_space<vmem>>, %arg4: memref<2x3x32x96xf32, #tpu.memory_space<vmem>>, %arg5: memref<2x1x96xf32, #tpu.memory_space<vmem>>, %arg6: memref<2x96x32xf32, #tpu.memory_space<vmem>>, %arg7: memref<2x1x32xf32, #tpu.memory_space<vmem>>, %arg8: memref<8x1xf32, #tpu.memory_space<vmem>>) attributes {dimension_semantics = [], scalar_prefetch = 0 : i64, scratch_operands = 0 : i64, tpu.core_type = #tpu.core_type<tc>} {
    %c0 = arith.constant 0 : index
    %c0_0 = arith.constant 0 : index
    %c0_1 = arith.constant 0 : index
    %0 = vector.load %arg0[%c0, %c0_0, %c0_1] : memref<2x8x33xf32, #tpu.memory_space<vmem>>, vector<1x8x33xf32>
    %1 = vector.shape_cast %0 : vector<1x8x33xf32> to vector<8x33xf32>
    %c0_2 = arith.constant 0 : index
    %c0_3 = arith.constant 0 : index
    %c0_4 = arith.constant 0 : index
    %2 = vector.load %arg1[%c0_2, %c0_3, %c0_4] : memref<2x33x100xf32, #tpu.memory_space<vmem>>, vector<1x33x100xf32>
    %3 = vector.shape_cast %2 : vector<1x33x100xf32> to vector<33x100xf32>
    %cst = arith.constant dense<0.000000e+00> : vector<8x100xf32>
    %4 = tpu.matmul %1, %3, %cst {dimension_numbers = #tpu.dot_dimension_numbers<[1], [0], [0], [1], [0, 0, 1, 1], [], []>} : vector<8x33xf32>, vector<33x100xf32>, vector<8x100xf32> -> vector<8x100xf32>
    %5 = vector.extract_strided_slice %4 {offsets = [0, 0], sizes = [8, 96], strides = [1, 1]} : vector<8x100xf32> to vector<8x96xf32>
    %cst_5 = arith.constant 0.000000e+00 : f32
    %6 = vector.broadcast %cst_5 : f32 to vector<8x96xf32>
    %7 = arith.maximumf %5, %6 : vector<8x96xf32>
    %8 = vector.extract_strided_slice %4 {offsets = [0, 96], sizes = [8, 2], strides = [1, 1]} : vector<8x100xf32> to vector<8x2xf32>
    %9 = vector.extract_strided_slice %4 {offsets = [0, 98], sizes = [8, 2], strides = [1, 1]} : vector<8x100xf32> to vector<8x2xf32>
    %c0_6 = arith.constant 0 : index
    %c0_7 = arith.constant 0 : index
    %c0_8 = arith.constant 0 : index
    %10 = vector.load %arg2[%c0_6, %c0_7, %c0_8] : memref<2x96x96xf32, #tpu.memory_space<vmem>>, vector<1x96x96xf32>
    %11 = vector.shape_cast %10 : vector<1x96x96xf32> to vector<96x96xf32>
    %cst_9 = arith.constant dense<0.000000e+00> : vector<8x96xf32>
    %12 = tpu.matmul %7, %11, %cst_9 {dimension_numbers = #tpu.dot_dimension_numbers<[1], [0], [0], [1], [0, 0, 1, 1], [], []>} : vector<8x96xf32>, vector<96x96xf32>, vector<8x96xf32> -> vector<8x96xf32>
    %c0_10 = arith.constant 0 : index
    %c0_11 = arith.constant 0 : index
    %c0_12 = arith.constant 0 : index
    %13 = vector.load %arg3[%c0_10, %c0_11, %c0_12] : memref<2x1x96xf32, #tpu.memory_space<vmem>>, vector<1x1x96xf32>
    %14 = vector.shape_cast %13 : vector<1x1x96xf32> to vector<1x96xf32>
    %15 = vector.broadcast %14 : vector<1x96xf32> to vector<8x96xf32>
    %16 = arith.addf %12, %15 : vector<8x96xf32>
    %cst_13 = arith.constant 0.000000e+00 : f32
    %17 = vector.broadcast %cst_13 : f32 to vector<8x96xf32>
    %18 = arith.maximumf %16, %17 : vector<8x96xf32>
    %19 = vector.extract_strided_slice %18 {offsets = [0, 0], sizes = [8, 32], strides = [1, 1]} : vector<8x96xf32> to vector<8x32xf32>
    %20 = vector.extract_strided_slice %8 {offsets = [0, 0], sizes = [8, 1], strides = [1, 1]} : vector<8x2xf32> to vector<8x1xf32>
    %21 = vector.extract_strided_slice %8 {offsets = [0, 1], sizes = [8, 1], strides = [1, 1]} : vector<8x2xf32> to vector<8x1xf32>
    %22 = arith.subf %20, %21 : vector<8x1xf32>
    %23 = arith.negf %22 : vector<8x1xf32>
    %24 = math.exp %23 : vector<8x1xf32>
    %cst_14 = arith.constant 1.000000e+00 : f32
    %25 = vector.broadcast %cst_14 : f32 to vector<8x1xf32>
    %26 = arith.addf %25, %24 : vector<8x1xf32>
    %27 = arith.divf %25, %26 : vector<8x1xf32>
    %cst_15 = arith.constant 1.000000e+00 : f32
    %28 = vector.broadcast %cst_15 : f32 to vector<8x1xf32>
    %29 = arith.subf %28, %27 : vector<8x1xf32>
    %30 = vector.extract_strided_slice %18 {offsets = [0, 32], sizes = [8, 32], strides = [1, 1]} : vector<8x96xf32> to vector<8x32xf32>
    %31 = vector.broadcast %27 : vector<8x1xf32> to vector<8x32xf32>
    %32 = arith.mulf %30, %31 : vector<8x32xf32>
    %33 = vector.extract_strided_slice %18 {offsets = [0, 64], sizes = [8, 32], strides = [1, 1]} : vector<8x96xf32> to vector<8x32xf32>
    %34 = vector.broadcast %29 : vector<8x1xf32> to vector<8x32xf32>
    %35 = arith.mulf %33, %34 : vector<8x32xf32>
    %36 = arith.addf %32, %35 : vector<8x32xf32>
    %37 = arith.negf %9 : vector<8x2xf32>
    %38 = math.exp %37 : vector<8x2xf32>
    %cst_16 = arith.constant 1.000000e+00 : f32
    %39 = vector.broadcast %cst_16 : f32 to vector<8x2xf32>
    %40 = arith.addf %39, %38 : vector<8x2xf32>
    %41 = arith.divf %39, %40 : vector<8x2xf32>
    %42 = vector.extract_strided_slice %41 {offsets = [0, 1], sizes = [8, 1], strides = [1, 1]} : vector<8x2xf32> to vector<8x1xf32>
    %43 = vector.broadcast %42 : vector<8x1xf32> to vector<8x32xf32>
    %44 = arith.mulf %19, %43 : vector<8x32xf32>
    %45 = vector.extract_strided_slice %41 {offsets = [0, 0], sizes = [8, 1], strides = [1, 1]} : vector<8x2xf32> to vector<8x1xf32>
    %46 = vector.broadcast %45 : vector<8x1xf32> to vector<8x32xf32>
    %47 = arith.mulf %36, %46 : vector<8x32xf32>
    %c0_17 = arith.constant 0 : index
    %c0_18 = arith.constant 0 : index
    %c0_19 = arith.constant 0 : index
    %c0_20 = arith.constant 0 : index
    %48 = vector.load %arg4[%c0_17, %c0_18, %c0_19, %c0_20] : memref<2x3x32x96xf32, #tpu.memory_space<vmem>>, vector<1x1x32x96xf32>
    %49 = vector.shape_cast %48 : vector<1x1x32x96xf32> to vector<32x96xf32>
    %cst_21 = arith.constant dense<0.000000e+00> : vector<8x96xf32>
    %50 = tpu.matmul %44, %49, %cst_21 {dimension_numbers = #tpu.dot_dimension_numbers<[1], [0], [0], [1], [0, 0, 1, 1], [], []>} : vector<8x32xf32>, vector<32x96xf32>, vector<8x96xf32> -> vector<8x96xf32>
    %51 = arith.mulf %44, %47 : vector<8x32xf32>
    %c0_22 = arith.constant 0 : index
    %c1 = arith.constant 1 : index
    %c0_23 = arith.constant 0 : index
    %c0_24 = arith.constant 0 : index
    %52 = vector.load %arg4[%c0_22, %c1, %c0_23, %c0_24] : memref<2x3x32x96xf32, #tpu.memory_space<vmem>>, vector<1x1x32x96xf32>
    %53 = vector.shape_cast %52 : vector<1x1x32x96xf32> to vector<32x96xf32>
    %cst_25 = arith.constant dense<0.000000e+00> : vector<8x96xf32>
    %54 = tpu.matmul %51, %53, %cst_25 {dimension_numbers = #tpu.dot_dimension_numbers<[1], [0], [0], [1], [0, 0, 1, 1], [], []>} : vector<8x32xf32>, vector<32x96xf32>, vector<8x96xf32> -> vector<8x96xf32>
    %55 = arith.addf %50, %54 : vector<8x96xf32>
    %c0_26 = arith.constant 0 : index
    %c2 = arith.constant 2 : index
    %c0_27 = arith.constant 0 : index
    %c0_28 = arith.constant 0 : index
    %56 = vector.load %arg4[%c0_26, %c2, %c0_27, %c0_28] : memref<2x3x32x96xf32, #tpu.memory_space<vmem>>, vector<1x1x32x96xf32>
    %57 = vector.shape_cast %56 : vector<1x1x32x96xf32> to vector<32x96xf32>
    %cst_29 = arith.constant dense<0.000000e+00> : vector<8x96xf32>
    %58 = tpu.matmul %47, %57, %cst_29 {dimension_numbers = #tpu.dot_dimension_numbers<[1], [0], [0], [1], [0, 0, 1, 1], [], []>} : vector<8x32xf32>, vector<32x96xf32>, vector<8x96xf32> -> vector<8x96xf32>
    %59 = arith.addf %55, %58 : vector<8x96xf32>
    %c0_30 = arith.constant 0 : index
    %c0_31 = arith.constant 0 : index
    %c0_32 = arith.constant 0 : index
    %60 = vector.load %arg5[%c0_30, %c0_31, %c0_32] : memref<2x1x96xf32, #tpu.memory_space<vmem>>, vector<1x1x96xf32>
    %61 = vector.shape_cast %60 : vector<1x1x96xf32> to vector<1x96xf32>
    %62 = vector.broadcast %61 : vector<1x96xf32> to vector<8x96xf32>
    %63 = arith.addf %59, %62 : vector<8x96xf32>
    %cst_33 = arith.constant 0.000000e+00 : f32
    %64 = vector.broadcast %cst_33 : f32 to vector<8x96xf32>
    %65 = arith.maximumf %63, %64 : vector<8x96xf32>
    %c0_34 = arith.constant 0 : index
    %c0_35 = arith.constant 0 : index
    %c0_36 = arith.constant 0 : index
    %66 = vector.load %arg6[%c0_34, %c0_35, %c0_36] : memref<2x96x32xf32, #tpu.memory_space<vmem>>, vector<1x96x32xf32>
    %67 = vector.shape_cast %66 : vector<1x96x32xf32> to vector<96x32xf32>
    %cst_37 = arith.constant dense<0.000000e+00> : vector<8x32xf32>
    %68 = tpu.matmul %65, %67, %cst_37 {dimension_numbers = #tpu.dot_dimension_numbers<[1], [0], [0], [1], [0, 0, 1, 1], [], []>} : vector<8x96xf32>, vector<96x32xf32>, vector<8x32xf32> -> vector<8x32xf32>
    %c0_38 = arith.constant 0 : index
    %c0_39 = arith.constant 0 : index
    %c0_40 = arith.constant 0 : index
    %69 = vector.load %arg7[%c0_38, %c0_39, %c0_40] : memref<2x1x32xf32, #tpu.memory_space<vmem>>, vector<1x1x32xf32>
    %70 = vector.shape_cast %69 : vector<1x1x32xf32> to vector<1x32xf32>
    %71 = vector.broadcast %70 : vector<1x32xf32> to vector<8x32xf32>
    %72 = arith.addf %68, %71 : vector<8x32xf32>
    %cst_41 = arith.constant 0.000000e+00 : f32
    %73 = vector.broadcast %cst_41 : f32 to vector<8x32xf32>
    %74 = arith.maximumf %72, %73 : vector<8x32xf32>
    %c1_42 = arith.constant 1 : index
    %c0_43 = arith.constant 0 : index
    %c0_44 = arith.constant 0 : index
    %75 = vector.load %arg0[%c1_42, %c0_43, %c0_44] : memref<2x8x33xf32, #tpu.memory_space<vmem>>, vector<1x8x33xf32>
    %76 = vector.shape_cast %75 : vector<1x8x33xf32> to vector<8x33xf32>
    %c1_45 = arith.constant 1 : index
    %c0_46 = arith.constant 0 : index
    %c0_47 = arith.constant 0 : index
    %77 = vector.load %arg1[%c1_45, %c0_46, %c0_47] : memref<2x33x100xf32, #tpu.memory_space<vmem>>, vector<1x33x100xf32>
    %78 = vector.shape_cast %77 : vector<1x33x100xf32> to vector<33x100xf32>
    %cst_48 = arith.constant dense<0.000000e+00> : vector<8x100xf32>
    %79 = tpu.matmul %76, %78, %cst_48 {dimension_numbers = #tpu.dot_dimension_numbers<[1], [0], [0], [1], [0, 0, 1, 1], [], []>} : vector<8x33xf32>, vector<33x100xf32>, vector<8x100xf32> -> vector<8x100xf32>
    %80 = vector.extract_strided_slice %79 {offsets = [0, 0], sizes = [8, 96], strides = [1, 1]} : vector<8x100xf32> to vector<8x96xf32>
    %cst_49 = arith.constant 0.000000e+00 : f32
    %81 = vector.broadcast %cst_49 : f32 to vector<8x96xf32>
    %82 = arith.maximumf %80, %81 : vector<8x96xf32>
    %83 = vector.extract_strided_slice %79 {offsets = [0, 96], sizes = [8, 2], strides = [1, 1]} : vector<8x100xf32> to vector<8x2xf32>
    %84 = vector.extract_strided_slice %79 {offsets = [0, 98], sizes = [8, 2], strides = [1, 1]} : vector<8x100xf32> to vector<8x2xf32>
    %c1_50 = arith.constant 1 : index
    %c0_51 = arith.constant 0 : index
    %c0_52 = arith.constant 0 : index
    %85 = vector.load %arg2[%c1_50, %c0_51, %c0_52] : memref<2x96x96xf32, #tpu.memory_space<vmem>>, vector<1x96x96xf32>
    %86 = vector.shape_cast %85 : vector<1x96x96xf32> to vector<96x96xf32>
    %cst_53 = arith.constant dense<0.000000e+00> : vector<8x96xf32>
    %87 = tpu.matmul %82, %86, %cst_53 {dimension_numbers = #tpu.dot_dimension_numbers<[1], [0], [0], [1], [0, 0, 1, 1], [], []>} : vector<8x96xf32>, vector<96x96xf32>, vector<8x96xf32> -> vector<8x96xf32>
    %c1_54 = arith.constant 1 : index
    %c0_55 = arith.constant 0 : index
    %c0_56 = arith.constant 0 : index
    %88 = vector.load %arg3[%c1_54, %c0_55, %c0_56] : memref<2x1x96xf32, #tpu.memory_space<vmem>>, vector<1x1x96xf32>
    %89 = vector.shape_cast %88 : vector<1x1x96xf32> to vector<1x96xf32>
    %90 = vector.broadcast %89 : vector<1x96xf32> to vector<8x96xf32>
    %91 = arith.addf %87, %90 : vector<8x96xf32>
    %cst_57 = arith.constant 0.000000e+00 : f32
    %92 = vector.broadcast %cst_57 : f32 to vector<8x96xf32>
    %93 = arith.maximumf %91, %92 : vector<8x96xf32>
    %94 = vector.extract_strided_slice %93 {offsets = [0, 0], sizes = [8, 32], strides = [1, 1]} : vector<8x96xf32> to vector<8x32xf32>
    %95 = vector.extract_strided_slice %83 {offsets = [0, 0], sizes = [8, 1], strides = [1, 1]} : vector<8x2xf32> to vector<8x1xf32>
    %96 = vector.extract_strided_slice %83 {offsets = [0, 1], sizes = [8, 1], strides = [1, 1]} : vector<8x2xf32> to vector<8x1xf32>
    %97 = arith.subf %95, %96 : vector<8x1xf32>
    %98 = arith.negf %97 : vector<8x1xf32>
    %99 = math.exp %98 : vector<8x1xf32>
    %cst_58 = arith.constant 1.000000e+00 : f32
    %100 = vector.broadcast %cst_58 : f32 to vector<8x1xf32>
    %101 = arith.addf %100, %99 : vector<8x1xf32>
    %102 = arith.divf %100, %101 : vector<8x1xf32>
    %cst_59 = arith.constant 1.000000e+00 : f32
    %103 = vector.broadcast %cst_59 : f32 to vector<8x1xf32>
    %104 = arith.subf %103, %102 : vector<8x1xf32>
    %105 = vector.extract_strided_slice %93 {offsets = [0, 32], sizes = [8, 32], strides = [1, 1]} : vector<8x96xf32> to vector<8x32xf32>
    %106 = vector.broadcast %102 : vector<8x1xf32> to vector<8x32xf32>
    %107 = arith.mulf %105, %106 : vector<8x32xf32>
    %108 = vector.extract_strided_slice %93 {offsets = [0, 64], sizes = [8, 32], strides = [1, 1]} : vector<8x96xf32> to vector<8x32xf32>
    %109 = vector.broadcast %104 : vector<8x1xf32> to vector<8x32xf32>
    %110 = arith.mulf %108, %109 : vector<8x32xf32>
    %111 = arith.addf %107, %110 : vector<8x32xf32>
    %112 = arith.negf %84 : vector<8x2xf32>
    %113 = math.exp %112 : vector<8x2xf32>
    %cst_60 = arith.constant 1.000000e+00 : f32
    %114 = vector.broadcast %cst_60 : f32 to vector<8x2xf32>
    %115 = arith.addf %114, %113 : vector<8x2xf32>
    %116 = arith.divf %114, %115 : vector<8x2xf32>
    %117 = vector.extract_strided_slice %116 {offsets = [0, 1], sizes = [8, 1], strides = [1, 1]} : vector<8x2xf32> to vector<8x1xf32>
    %118 = vector.broadcast %117 : vector<8x1xf32> to vector<8x32xf32>
    %119 = arith.mulf %94, %118 : vector<8x32xf32>
    %120 = vector.extract_strided_slice %116 {offsets = [0, 0], sizes = [8, 1], strides = [1, 1]} : vector<8x2xf32> to vector<8x1xf32>
    %121 = vector.broadcast %120 : vector<8x1xf32> to vector<8x32xf32>
    %122 = arith.mulf %111, %121 : vector<8x32xf32>
    %c1_61 = arith.constant 1 : index
    %c0_62 = arith.constant 0 : index
    %c0_63 = arith.constant 0 : index
    %c0_64 = arith.constant 0 : index
    %123 = vector.load %arg4[%c1_61, %c0_62, %c0_63, %c0_64] : memref<2x3x32x96xf32, #tpu.memory_space<vmem>>, vector<1x1x32x96xf32>
    %124 = vector.shape_cast %123 : vector<1x1x32x96xf32> to vector<32x96xf32>
    %cst_65 = arith.constant dense<0.000000e+00> : vector<8x96xf32>
    %125 = tpu.matmul %119, %124, %cst_65 {dimension_numbers = #tpu.dot_dimension_numbers<[1], [0], [0], [1], [0, 0, 1, 1], [], []>} : vector<8x32xf32>, vector<32x96xf32>, vector<8x96xf32> -> vector<8x96xf32>
    %126 = arith.mulf %119, %122 : vector<8x32xf32>
    %c1_66 = arith.constant 1 : index
    %c1_67 = arith.constant 1 : index
    %c0_68 = arith.constant 0 : index
    %c0_69 = arith.constant 0 : index
    %127 = vector.load %arg4[%c1_66, %c1_67, %c0_68, %c0_69] : memref<2x3x32x96xf32, #tpu.memory_space<vmem>>, vector<1x1x32x96xf32>
    %128 = vector.shape_cast %127 : vector<1x1x32x96xf32> to vector<32x96xf32>
    %cst_70 = arith.constant dense<0.000000e+00> : vector<8x96xf32>
    %129 = tpu.matmul %126, %128, %cst_70 {dimension_numbers = #tpu.dot_dimension_numbers<[1], [0], [0], [1], [0, 0, 1, 1], [], []>} : vector<8x32xf32>, vector<32x96xf32>, vector<8x96xf32> -> vector<8x96xf32>
    %130 = arith.addf %125, %129 : vector<8x96xf32>
    %c1_71 = arith.constant 1 : index
    %c2_72 = arith.constant 2 : index
    %c0_73 = arith.constant 0 : index
    %c0_74 = arith.constant 0 : index
    %131 = vector.load %arg4[%c1_71, %c2_72, %c0_73, %c0_74] : memref<2x3x32x96xf32, #tpu.memory_space<vmem>>, vector<1x1x32x96xf32>
    %132 = vector.shape_cast %131 : vector<1x1x32x96xf32> to vector<32x96xf32>
    %cst_75 = arith.constant dense<0.000000e+00> : vector<8x96xf32>
    %133 = tpu.matmul %122, %132, %cst_75 {dimension_numbers = #tpu.dot_dimension_numbers<[1], [0], [0], [1], [0, 0, 1, 1], [], []>} : vector<8x32xf32>, vector<32x96xf32>, vector<8x96xf32> -> vector<8x96xf32>
    %134 = arith.addf %130, %133 : vector<8x96xf32>
    %c1_76 = arith.constant 1 : index
    %c0_77 = arith.constant 0 : index
    %c0_78 = arith.constant 0 : index
    %135 = vector.load %arg5[%c1_76, %c0_77, %c0_78] : memref<2x1x96xf32, #tpu.memory_space<vmem>>, vector<1x1x96xf32>
    %136 = vector.shape_cast %135 : vector<1x1x96xf32> to vector<1x96xf32>
    %137 = vector.broadcast %136 : vector<1x96xf32> to vector<8x96xf32>
    %138 = arith.addf %134, %137 : vector<8x96xf32>
    %cst_79 = arith.constant 0.000000e+00 : f32
    %139 = vector.broadcast %cst_79 : f32 to vector<8x96xf32>
    %140 = arith.maximumf %138, %139 : vector<8x96xf32>
    %c1_80 = arith.constant 1 : index
    %c0_81 = arith.constant 0 : index
    %c0_82 = arith.constant 0 : index
    %141 = vector.load %arg6[%c1_80, %c0_81, %c0_82] : memref<2x96x32xf32, #tpu.memory_space<vmem>>, vector<1x96x32xf32>
    %142 = vector.shape_cast %141 : vector<1x96x32xf32> to vector<96x32xf32>
    %cst_83 = arith.constant dense<0.000000e+00> : vector<8x32xf32>
    %143 = tpu.matmul %140, %142, %cst_83 {dimension_numbers = #tpu.dot_dimension_numbers<[1], [0], [0], [1], [0, 0, 1, 1], [], []>} : vector<8x96xf32>, vector<96x32xf32>, vector<8x32xf32> -> vector<8x32xf32>
    %c1_84 = arith.constant 1 : index
    %c0_85 = arith.constant 0 : index
    %c0_86 = arith.constant 0 : index
    %144 = vector.load %arg7[%c1_84, %c0_85, %c0_86] : memref<2x1x32xf32, #tpu.memory_space<vmem>>, vector<1x1x32xf32>
    %145 = vector.shape_cast %144 : vector<1x1x32xf32> to vector<1x32xf32>
    %146 = vector.broadcast %145 : vector<1x32xf32> to vector<8x32xf32>
    %147 = arith.addf %143, %146 : vector<8x32xf32>
    %cst_87 = arith.constant 0.000000e+00 : f32
    %148 = vector.broadcast %cst_87 : f32 to vector<8x32xf32>
    %149 = arith.maximumf %147, %148 : vector<8x32xf32>
    %150 = arith.mulf %74, %149 : vector<8x32xf32>
    %cst_88 = arith.constant dense<0.000000e+00> : vector<8xf32>
    %151 = vector.multi_reduction <add>, %150, %cst_88 [1] : vector<8x32xf32> to vector<8xf32>
    %152 = vector.shape_cast %151 : vector<8xf32> to vector<8x1xf32>
    %c0_89 = arith.constant 0 : index
    %c0_90 = arith.constant 0 : index
    %153 = vector.load %arg8[%c0_89, %c0_90] : memref<8x1xf32, #tpu.memory_space<vmem>>, vector<8x1xf32>
    tpu.vector_store %arg8[%c0_89, %c0_90], %152 {strides = array<i32>} : memref<8x1xf32, #tpu.memory_space<vmem>>, vector<8x1xf32>,
    return
  }
}

</mosaic_0001>

<llo_original>
// kernel: tpu_custom_call.1
$region0: #{tpu_custom_call.1}
  #allocation0 [shape = 'u32[]', space=smem, size = 0x4, offset = 0x4, fixed_abs, tag = 'smem constant byte address 0x4 - core index']
  #allocation1 [shape = 'u32[72,128]{1,0:T(1,128)}', space=vmem, size = 0x9000, scoped, tag = 'internal scratch']
  %s0 = inlined_call_operand.vmem [shape: f32[2,8,33], index: 0, kind: input, shape index: {}]
  %s1 = inlined_call_operand.vmem [shape: f32[2,33,100], index: 1, kind: input, shape index: {}]
  %s2 = inlined_call_operand.vmem [shape: f32[2,96,96], index: 2, kind: input, shape index: {}]
  %s3 = inlined_call_operand.vmem [shape: f32[2,1,96], index: 3, kind: input, shape index: {}]
  %s4 = inlined_call_operand.hbm [shape: f32[2,3,32,96], index: 4, kind: input, shape index: {}]
  %s5 = inlined_call_operand.vmem [shape: f32[2,1,96], index: 5, kind: input, shape index: {}]
  %s6 = inlined_call_operand.vmem [shape: f32[2,96,32], index: 6, kind: input, shape index: {}]
  %s7 = inlined_call_operand.vmem [shape: f32[2,1,32], index: 7, kind: input, shape index: {}]
  %s8 = inlined_call_operand.vmem [shape: f32[8,1], index: 8, kind: output, shape index: {}]
  %s9 = sld [smem:[#allocation0]]
  $region46: #{tpu_custom_call.1} parent=0
    _
  %s11 = ssub.s32 1, %s9
  %s12 = scalar_select 0, %s11, %s9
  $region1: #{tpu_custom_call.1} parent=0
    #allocation2 [shape = 'u8[98304]{0}', space=vmem, size = 0x18000, scoped, tag = 'input window, operand 4, single buffered']
    #allocation3 [shape = 's32[1]{0}', space=sflag, size = 0x4, scoped, tag = 'scoped memory for tpu_custom_call.1']
    %13 = vsyncpa [#allocation3], 0
    // Predicated region
    $region2: #{tpu_custom_call.1} parent=1 // pred_check
      _
    $region3: #{tpu_custom_call.1} parent=1 // pred_check_branch
      %15 = sbr.rel (0) target = $region5
    $region4: #{tpu_custom_call.1} parent=1 // pred_region
      _
    $region5: #{tpu_custom_call.1} parent=1 // pred_fallthru
      _
    // Predicated region
    $region6: #{tpu_custom_call.1} parent=1 // pred_check
      _
    $region7: #{tpu_custom_call.1} parent=1 // pred_check_branch
      %17 = sbr.rel (0) target = $region9
    $region8: #{tpu_custom_call.1} parent=1 // pred_region
      _
    $region9: #{tpu_custom_call.1} parent=1 // pred_fallthru
      _
    // Predicated region
    $region10: #{tpu_custom_call.1} parent=1 // pred_check
      _
    $region11: #{tpu_custom_call.1} parent=1 // pred_check_branch
      %19 = sbr.rel (0) target = $region13
    $region12: #{tpu_custom_call.1} parent=1 // pred_region
      _
    $region13: #{tpu_custom_call.1} parent=1 // pred_fallthru
      _
    // Predicated region
    $region14: #{tpu_custom_call.1} parent=1 // pred_check
      _
    $region15: #{tpu_custom_call.1} parent=1 // pred_check_branch
      %21 = sbr.rel (0) target = $region17
    $region16: #{tpu_custom_call.1} parent=1 // pred_region
      _
    $region17: #{tpu_custom_call.1} parent=1 // pred_fallthru
      _
    // Predicated region
    $region18: #{tpu_custom_call.1} parent=1 // pred_check
      _
    $region19: #{tpu_custom_call.1} parent=1 // pred_check_branch
      %23 = sbr.rel (0) target = $region21
    $region20: #{tpu_custom_call.1} parent=1 // pred_region
      %25 = vsyncadd [#allocation3], 0
      %s26 = sshll.u32 %s4, 4
      %s27 = int_to_ptr.hbm [resolvable:$true] %s26
      %s28 = sshll.u32 [#allocation2], 4
      %s29 = int_to_ptr.vmem [resolvable:$true] %s28
      %34 = dma.hbm_to_vmem [thread:$0]  %s27, 3072, %s29, [#allocation3], 128, 128, 8
    $region21: #{tpu_custom_call.1} parent=1 // pred_fallthru
      _
    // Predicated region
    $region22: #{tpu_custom_call.1} parent=1 // pred_check
      _
    $region23: #{tpu_custom_call.1} parent=1 // pred_check_branch
      %36 = sbr.rel (0) target = $region25
    $region24: #{tpu_custom_call.1} parent=1 // pred_region
      _
    $region25: #{tpu_custom_call.1} parent=1 // pred_fallthru
      _
    // Predicated region
    $region26: #{tpu_custom_call.1} parent=1 // pred_check
      _
    $region27: #{tpu_custom_call.1} parent=1 // pred_check_branch
      %38 = sbr.rel (0) target = $region29
    $region28: #{tpu_custom_call.1} parent=1 // pred_region
      _
    $region29: #{tpu_custom_call.1} parent=1 // pred_fallthru
      _
    // Predicated region
    $region30: #{tpu_custom_call.1} parent=1 // pred_check
      _
    $region31: #{tpu_custom_call.1} parent=1 // pred_check_branch
      %40 = sbr.rel (0) target = $region33
    $region32: #{tpu_custom_call.1} parent=1 // pred_region
      _
    $region33: #{tpu_custom_call.1} parent=1 // pred_fallthru
      _
    // Predicated region
    $region34: #{tpu_custom_call.1} parent=1 // pred_check
      _
    $region35: #{tpu_custom_call.1} parent=1 // pred_check_branch
      %42 = sbr.rel (0) target = $region37
    $region36: #{tpu_custom_call.1} parent=1 // pred_region
      %44 = dma.done [#allocation3], 3072
    $region37: #{tpu_custom_call.1} parent=1 // pred_fallthru
      _
    %v45 = vld [vmem:[%s0] sm:$0xff]
    %v46 = vld [vmem:[%s1] sm:$0xff]
    %v47 = vld [vmem:[%s1 + $0x8] sm:$0xff]
    %v48 = vld [vmem:[%s1 + $0x10] sm:$0xff]
    %v49 = vld [vmem:[%s1 + $0x18] sm:$0xff]
    %v50 = vld [vmem:[%s1 + $0x20] sm:$0x1]
    %vm51 = vcmask 269312
    %v53 = vsel %vm51, %v45, 0
    %vm55 = vcmask 1040384
    %v57 = vsel %vm55, %v50, 0
    %59 = vmatpush.msra.mxu0 0.0
    %60 = vmatpush.msra.mxu0 0.0
    %61 = vmatpush.msra.mxu0 0.0
    %62 = vmatpush.msra.mxu0 0.0
    %63 = vmatpush.msra.mxu0 0.0
    %64 = vmatpush.msra.mxu0 0.0
    %65 = vmatpush.msra.mxu0 0.0
    %66 = vmatpush.msra.mxu0 0.0
    %67 = vmatpush.msra.mxu0 0.0
    %68 = vmatpush.msra.mxu0 0.0
    %69 = vmatpush.msra.mxu0 0.0
    %70 = vmatpush.msra.mxu0 %v57
    %71 = vmatpush.msra.mxu0 %v49
    %72 = vmatpush.msra.mxu0 %v48
    %73 = vmatpush.msra.mxu0 %v47
    %74 = vmatpush.msra.mxu0 %v46
    %75 = vmatmul.f32.gmra.mxu0 %v53
    %v76 = vpop.f32.mrf.mxu0
    %v77 = vadd.f32 0.0, %v76
    %78 = vdwg.mxu0
    %v79 = vmax.f32 %v77, 0.0
    %v80 = vld [vmem:[%s2] sm:$0xff]
    %v81 = vld [vmem:[%s2 + $0x8] sm:$0xff]
    %v82 = vld [vmem:[%s2 + $0x10] sm:$0xff]
    %v83 = vld [vmem:[%s2 + $0x18] sm:$0xff]
    %v84 = vld [vmem:[%s2 + $0x20] sm:$0xff]
    %v85 = vld [vmem:[%s2 + $0x28] sm:$0xff]
    %v86 = vld [vmem:[%s2 + $0x30] sm:$0xff]
    %v87 = vld [vmem:[%s2 + $0x38] sm:$0xff]
    %v88 = vld [vmem:[%s2 + $0x40] sm:$0xff]
    %v89 = vld [vmem:[%s2 + $0x48] sm:$0xff]
    %v90 = vld [vmem:[%s2 + $0x50] sm:$0xff]
    %v91 = vld [vmem:[%s2 + $0x58] sm:$0xff]
    %v92 = vld [vmem:[%s3] sm:$0x1]
    %v94 = vperm.slane %v92, 0
    %vm96 = vcmask 785408
    %v98 = vsel %vm96, %v79, 0
    %100 = vmatpush.msra.mxu0 0.0
    %101 = vmatpush.msra.mxu0 0.0
    %102 = vmatpush.msra.mxu0 0.0
    %103 = vmatpush.msra.mxu0 0.0
    %104 = vmatpush.msra.mxu0 %v91
    %105 = vmatpush.msra.mxu0 %v90
    %106 = vmatpush.msra.mxu0 %v89
    %107 = vmatpush.msra.mxu0 %v88
    %108 = vmatpush.msra.mxu0 %v87
    %109 = vmatpush.msra.mxu0 %v86
    %110 = vmatpush.msra.mxu0 %v85
    %111 = vmatpush.msra.mxu0 %v84
    %112 = vmatpush.msra.mxu0 %v83
    %113 = vmatpush.msra.mxu0 %v82
    %114 = vmatpush.msra.mxu0 %v81
    %115 = vmatpush.msra.mxu0 %v80
    %116 = vmatmul.f32.gmra.mxu0 %v98
    %v117 = vpop.f32.mrf.mxu0
    %v118 = vadd.f32 %v94, %v117
    %119 = vdwg.mxu0
    %v120 = vmax.f32 %v118, 0.0
    %122 = vrot.lane.b32.xlu0 %v77, 127
    %v123 = vpop.permute.xlu0 %122
    %v125 = vsub.f32 %v77, %v123
    %v126 = vxor.u32 %v125, 2147483648
    %v127 = vmul.f32 %v126, 1.442695
    %v128 = vpow.pop %v127
    %v129 = vadd.f32 %v128, 1.0
    %v130 = vrcp.pop %v129
    %v131 = vmul.f32 %v129, %v130
    %v132 = vsub.f32 1.0, %v131
    %v133 = vmul.f32 %v130, %v132
    %v134 = vadd.f32 %v130, %v133
    %vm135 = vweird.f32 %v129
    %vm136 = vweird.f32 %v130
    %vm137 = vmor %vm135, %vm136
    %v138 = vsel %vm137, %v130, %v134
    %v139 = vand.u32 2147483647, %v129
    %vm140 = vcmp.eq.f32.partialorder %v139, 8.507059e+37
    %v141 = vand.u32 %v129, 2147483648
    %v142 = vor.u32 1.1754944e-38, %v141
    %v143 = vsel %vm140, %v142, %v138
    %v144 = vmul.f32 1.0, %v143
    %v145 = vsub.f32 1.0, %v144
    %147 = vset.pattern.permute.xlu0 96
    %148 = vperm.xlu0 %147, %v144
    %v149 = vpop.permute.xlu0 %148
    %v151 = vmul.f32 %v120, %v149
    %153 = vset.pattern.permute.xlu0 96
    %154 = vperm.xlu0 %153, %v145
    %v155 = vpop.permute.xlu0 %154
    %v157 = vmul.f32 %v120, %v155
    %159 = vrot.lane.b32.xlu0 %v157, 96
    %v160 = vpop.permute.xlu0 %159
    %v162 = vadd.f32 %v151, %v160
    %v163 = vxor.u32 %v77, 2147483648
    %v164 = vmul.f32 %v163, 1.442695
    %v165 = vpow.pop %v164
    %v166 = vadd.f32 %v165, 1.0
    %v167 = vrcp.pop %v166
    %v168 = vmul.f32 %v166, %v167
    %v169 = vsub.f32 1.0, %v168
    %v170 = vmul.f32 %v167, %v169
    %v171 = vadd.f32 %v167, %v170
    %vm172 = vweird.f32 %v166
    %vm173 = vweird.f32 %v167
    %vm174 = vmor %vm172, %vm173
    %v175 = vsel %vm174, %v167, %v171
    %v176 = vand.u32 2147483647, %v166
    %vm177 = vcmp.eq.f32.partialorder %v176, 8.507059e+37
    %v178 = vand.u32 %v166, 2147483648
    %v179 = vor.u32 1.1754944e-38, %v178
    %v180 = vsel %vm177, %v179, %v175
    %v181 = vmul.f32 1.0, %v180
    %183 = vset.pattern.permute.xlu0 99
    %184 = vperm.xlu0 %183, %v181
    %v185 = vpop.permute.xlu0 %184
    %v187 = vmul.f32 %v120, %v185
    %188 = vset.pattern.permute.xlu0 98
    %189 = vperm.xlu0 %188, %v181
    %v190 = vpop.permute.xlu0 %189
    %v192 = vmul.f32 %v162, %v190
    %v193 = vld [vmem:[#allocation2] sm:$0xff]
    %v194 = vld [vmem:[#allocation2 + $0x8] sm:$0xff]
    %v195 = vld [vmem:[#allocation2 + $0x10] sm:$0xff]
    %v196 = vld [vmem:[#allocation2 + $0x18] sm:$0xff]
    %198 = vrot.lane.b32.xlu0 %v192, 96
    %v199 = vpop.permute.xlu0 %198
    %v201 = vmul.f32 %v187, %v199
    %s202 = scalar_lea.vmem [#allocation2], 32
    %v203 = vld [vmem:[%s202] sm:$0xff]
    %v204 = vld [vmem:[%s202 + $0x8] sm:$0xff]
    %v205 = vld [vmem:[%s202 + $0x10] sm:$0xff]
    %v206 = vld [vmem:[%s202 + $0x18] sm:$0xff]
    %vm207 = vcmask 261120
    %v209 = vsel %vm207, %v201, 0
    %211 = vmatpush.msra.mxu0 0.0
    %212 = vmatpush.msra.mxu0 0.0
    %213 = vmatpush.msra.mxu0 0.0
    %214 = vmatpush.msra.mxu0 0.0
    %215 = vmatpush.msra.mxu0 0.0
    %216 = vmatpush.msra.mxu0 0.0
    %217 = vmatpush.msra.mxu0 0.0
    %218 = vmatpush.msra.mxu0 0.0
    %219 = vmatpush.msra.mxu0 0.0
    %220 = vmatpush.msra.mxu0 0.0
    %221 = vmatpush.msra.mxu0 0.0
    %222 = vmatpush.msra.mxu0 0.0
    %223 = vmatpush.msra.mxu0 %v206
    %224 = vmatpush.msra.mxu0 %v205
    %225 = vmatpush.msra.mxu0 %v204
    %226 = vmatpush.msra.mxu0 %v203
    %227 = vmatmul.f32.gmra.mxu0 %v209
    %v228 = vpop.f32.mrf.mxu0
    %v229 = vadd.f32 0.0, %v228
    %230 = vdwg.mxu0
    %v232 = vsel %vm207, %v187, 0
    %234 = vmatpush.msra.mxu0 0.0
    %235 = vmatpush.msra.mxu0 0.0
    %236 = vmatpush.msra.mxu0 0.0
    %237 = vmatpush.msra.mxu0 0.0
    %238 = vmatpush.msra.mxu0 0.0
    %239 = vmatpush.msra.mxu0 0.0
    %240 = vmatpush.msra.mxu0 0.0
    %241 = vmatpush.msra.mxu0 0.0
    %242 = vmatpush.msra.mxu0 0.0
    %243 = vmatpush.msra.mxu0 0.0
    %244 = vmatpush.msra.mxu0 0.0
    %245 = vmatpush.msra.mxu0 0.0
    %246 = vmatpush.msra.mxu0 %v196
    %247 = vmatpush.msra.mxu0 %v195
    %248 = vmatpush.msra.mxu0 %v194
    %249 = vmatpush.msra.mxu0 %v193
    %250 = vmatmul.f32.gmra.mxu0 %v232
    %v251 = vpop.f32.mrf.mxu0
    %v252 = vadd.f32 %v229, %v251
    %253 = vdwg.mxu0
    %s254 = scalar_lea.vmem [#allocation2], 64
    %v255 = vld [vmem:[%s254] sm:$0xff]
    %v256 = vld [vmem:[%s254 + $0x8] sm:$0xff]
    %v257 = vld [vmem:[%s254 + $0x10] sm:$0xff]
    %v258 = vld [vmem:[%s254 + $0x18] sm:$0xff]
    %v259 = vsel %vm207, %v199, 0
    %261 = vmatpush.msra.mxu0 0.0
    %262 = vmatpush.msra.mxu0 0.0
    %263 = vmatpush.msra.mxu0 0.0
    %264 = vmatpush.msra.mxu0 0.0
    %265 = vmatpush.msra.mxu0 0.0
    %266 = vmatpush.msra.mxu0 0.0
    %267 = vmatpush.msra.mxu0 0.0
    %268 = vmatpush.msra.mxu0 0.0
    %269 = vmatpush.msra.mxu0 0.0
    %270 = vmatpush.msra.mxu0 0.0
    %271 = vmatpush.msra.mxu0 0.0
    %272 = vmatpush.msra.mxu0 0.0
    %273 = vmatpush.msra.mxu0 %v258
    %274 = vmatpush.msra.mxu0 %v257
    %275 = vmatpush.msra.mxu0 %v256
    %276 = vmatpush.msra.mxu0 %v255
    %277 = vmatmul.f32.gmra.mxu0 %v259
    %v278 = vpop.f32.mrf.mxu0
    %v279 = vadd.f32 0.0, %v278
    %280 = vdwg.mxu0
    %v281 = vadd.f32 %v252, %v279
    %v282 = vld [vmem:[%s5] sm:$0x1]
    %v284 = vperm.slane %v282, 0
    %v286 = vadd.f32 %v281, %v284
    %v287 = vmax.f32 %v286, 0.0
    %v288 = vld [vmem:[%s6] sm:$0xff]
    %v289 = vld [vmem:[%s6 + $0x8] sm:$0xff]
    %v290 = vld [vmem:[%s6 + $0x10] sm:$0xff]
    %v291 = vld [vmem:[%s6 + $0x18] sm:$0xff]
    %v292 = vld [vmem:[%s6 + $0x20] sm:$0xff]
    %v293 = vld [vmem:[%s6 + $0x28] sm:$0xff]
    %v294 = vld [vmem:[%s6 + $0x30] sm:$0xff]
    %v295 = vld [vmem:[%s6 + $0x38] sm:$0xff]
    %v296 = vld [vmem:[%s6 + $0x40] sm:$0xff]
    %v297 = vld [vmem:[%s6 + $0x48] sm:$0xff]
    %v298 = vld [vmem:[%s6 + $0x50] sm:$0xff]
    %v299 = vld [vmem:[%s6 + $0x58] sm:$0xff]
    %v300 = vld [vmem:[%s7] sm:$0x1]
    %v302 = vperm.slane %v300, 0
    %v305 = vsel %vm96, %v287, 0
    %307 = vmatpush.msra.mxu0 0.0
    %308 = vmatpush.msra.mxu0 0.0
    %309 = vmatpush.msra.mxu0 0.0
    %310 = vmatpush.msra.mxu0 0.0
    %311 = vmatpush.msra.mxu0 %v299
    %312 = vmatpush.msra.mxu0 %v298
    %313 = vmatpush.msra.mxu0 %v297
    %314 = vmatpush.msra.mxu0 %v296
    %315 = vmatpush.msra.mxu0 %v295
    %316 = vmatpush.msra.mxu0 %v294
    %317 = vmatpush.msra.mxu0 %v293
    %318 = vmatpush.msra.mxu0 %v292
    %319 = vmatpush.msra.mxu0 %v291
    %320 = vmatpush.msra.mxu0 %v290
    %321 = vmatpush.msra.mxu0 %v289
    %322 = vmatpush.msra.mxu0 %v288
    %323 = vmatmul.f32.gmra.mxu0 %v305
    %v324 = vpop.f32.mrf.mxu0
    %v325 = vadd.f32 %v302, %v324
    %326 = vdwg.mxu0
    %v327 = vmax.f32 %v325, 0.0
    %s328 = scalar_lea.vmem %s0, 8
    %v329 = vld [vmem:[%s328] sm:$0xff]
    %s330 = scalar_lea.vmem %s1, 40
    %v331 = vld [vmem:[%s330] sm:$0xff]
    %v332 = vld [vmem:[%s330 + $0x8] sm:$0xff]
    %v333 = vld [vmem:[%s330 + $0x10] sm:$0xff]
    %v334 = vld [vmem:[%s330 + $0x18] sm:$0xff]
    %v335 = vld [vmem:[%s330 + $0x20] sm:$0x1]
    %v337 = vsel %vm51, %v329, 0
    %v340 = vsel %vm55, %v335, 0
    %342 = vmatpush.msra.mxu0 0.0
    %343 = vmatpush.msra.mxu0 0.0
    %344 = vmatpush.msra.mxu0 0.0
    %345 = vmatpush.msra.mxu0 0.0
    %346 = vmatpush.msra.mxu0 0.0
    %347 = vmatpush.msra.mxu0 0.0
    %348 = vmatpush.msra.mxu0 0.0
    %349 = vmatpush.msra.mxu0 0.0
    %350 = vmatpush.msra.mxu0 0.0
    %351 = vmatpush.msra.mxu0 0.0
    %352 = vmatpush.msra.mxu0 0.0
    %353 = vmatpush.msra.mxu0 %v340
    %354 = vmatpush.msra.mxu0 %v334
    %355 = vmatpush.msra.mxu0 %v333
    %356 = vmatpush.msra.mxu0 %v332
    %357 = vmatpush.msra.mxu0 %v331
    %358 = vmatmul.f32.gmra.mxu0 %v337
    %v359 = vpop.f32.mrf.mxu0
    %v360 = vadd.f32 0.0, %v359
    %361 = vdwg.mxu0
    %v362 = vmax.f32 %v360, 0.0
    %s363 = scalar_lea.vmem %s2, 96
    %v364 = vld [vmem:[%s363] sm:$0xff]
    %v365 = vld [vmem:[%s363 + $0x8] sm:$0xff]
    %v366 = vld [vmem:[%s363 + $0x10] sm:$0xff]
    %v367 = vld [vmem:[%s363 + $0x18] sm:$0xff]
    %v368 = vld [vmem:[%s363 + $0x20] sm:$0xff]
    %v369 = vld [vmem:[%s363 + $0x28] sm:$0xff]
    %v370 = vld [vmem:[%s363 + $0x30] sm:$0xff]
    %v371 = vld [vmem:[%s363 + $0x38] sm:$0xff]
    %v372 = vld [vmem:[%s363 + $0x40] sm:$0xff]
    %v373 = vld [vmem:[%s363 + $0x48] sm:$0xff]
    %v374 = vld [vmem:[%s363 + $0x50] sm:$0xff]
    %v375 = vld [vmem:[%s363 + $0x58] sm:$0xff]
    %s376 = scalar_lea.vmem %s3, 1
    %v377 = vld [vmem:[%s376] sm:$0x1]
    %v379 = vperm.slane %v377, 0
    %v382 = vsel %vm96, %v362, 0
    %384 = vmatpush.msra.mxu0 0.0
    %385 = vmatpush.msra.mxu0 0.0
    %386 = vmatpush.msra.mxu0 0.0
    %387 = vmatpush.msra.mxu0 0.0
    %388 = vmatpush.msra.mxu0 %v375
    %389 = vmatpush.msra.mxu0 %v374
    %390 = vmatpush.msra.mxu0 %v373
    %391 = vmatpush.msra.mxu0 %v372
    %392 = vmatpush.msra.mxu0 %v371
    %393 = vmatpush.msra.mxu0 %v370
    %394 = vmatpush.msra.mxu0 %v369
    %395 = vmatpush.msra.mxu0 %v368
    %396 = vmatpush.msra.mxu0 %v367
    %397 = vmatpush.msra.mxu0 %v366
    %398 = vmatpush.msra.mxu0 %v365
    %399 = vmatpush.msra.mxu0 %v364
    %400 = vmatmul.f32.gmra.mxu0 %v382
    %v401 = vpop.f32.mrf.mxu0
    %v402 = vadd.f32 %v379, %v401
    %403 = vdwg.mxu0
    %v404 = vmax.f32 %v402, 0.0
    %406 = vrot.lane.b32.xlu0 %v360, 127
    %v407 = vpop.permute.xlu0 %406
    %v409 = vsub.f32 %v360, %v407
    %v410 = vxor.u32 %v409, 2147483648
    %v411 = vmul.f32 %v410, 1.442695
    %v412 = vpow.pop %v411
    %v413 = vadd.f32 %v412, 1.0
    %v414 = vrcp.pop %v413
    %v415 = vmul.f32 %v413, %v414
    %v416 = vsub.f32 1.0, %v415
    %v417 = vmul.f32 %v414, %v416
    %v418 = vadd.f32 %v414, %v417
    %vm419 = vweird.f32 %v413
    %vm420 = vweird.f32 %v414
    %vm421 = vmor %vm419, %vm420
    %v422 = vsel %vm421, %v414, %v418
    %v423 = vand.u32 2147483647, %v413
    %vm424 = vcmp.eq.f32.partialorder %v423, 8.507059e+37
    %v425 = vand.u32 %v413, 2147483648
    %v426 = vor.u32 1.1754944e-38, %v425
    %v427 = vsel %vm424, %v426, %v422
    %v428 = vmul.f32 1.0, %v427
    %v429 = vsub.f32 1.0, %v428
    %431 = vset.pattern.permute.xlu0 96
    %432 = vperm.xlu0 %431, %v428
    %v433 = vpop.permute.xlu0 %432
    %v435 = vmul.f32 %v404, %v433
    %437 = vset.pattern.permute.xlu0 96
    %438 = vperm.xlu0 %437, %v429
    %v439 = vpop.permute.xlu0 %438
    %v441 = vmul.f32 %v404, %v439
    %443 = vrot.lane.b32.xlu0 %v441, 96
    %v444 = vpop.permute.xlu0 %443
    %v446 = vadd.f32 %v435, %v444
    %v447 = vxor.u32 %v360, 2147483648
    %v448 = vmul.f32 %v447, 1.442695
    %v449 = vpow.pop %v448
    %v450 = vadd.f32 %v449, 1.0
    %v451 = vrcp.pop %v450
    %v452 = vmul.f32 %v450, %v451
    %v453 = vsub.f32 1.0, %v452
    %v454 = vmul.f32 %v451, %v453
    %v455 = vadd.f32 %v451, %v454
    %vm456 = vweird.f32 %v450
    %vm457 = vweird.f32 %v451
    %vm458 = vmor %vm456, %vm457
    %v459 = vsel %vm458, %v451, %v455
    %v460 = vand.u32 2147483647, %v450
    %vm461 = vcmp.eq.f32.partialorder %v460, 8.507059e+37
    %v462 = vand.u32 %v450, 2147483648
    %v463 = vor.u32 1.1754944e-38, %v462
    %v464 = vsel %vm461, %v463, %v459
    %v465 = vmul.f32 1.0, %v464
    %467 = vset.pattern.permute.xlu0 99
    %468 = vperm.xlu0 %467, %v465
    %v469 = vpop.permute.xlu0 %468
    %v471 = vmul.f32 %v404, %v469
    %472 = vset.pattern.permute.xlu0 98
    %473 = vperm.xlu0 %472, %v465
    %v474 = vpop.permute.xlu0 %473
    %v476 = vmul.f32 %v446, %v474
    %s477 = scalar_lea.vmem [#allocation2], 96
    %v478 = vld [vmem:[%s477] sm:$0xff]
    %v479 = vld [vmem:[%s477 + $0x8] sm:$0xff]
    %v480 = vld [vmem:[%s477 + $0x10] sm:$0xff]
    %v481 = vld [vmem:[%s477 + $0x18] sm:$0xff]
    %483 = vrot.lane.b32.xlu0 %v476, 96
    %v484 = vpop.permute.xlu0 %483
    %v486 = vmul.f32 %v471, %v484
    %s487 = scalar_lea.vmem [#allocation2], 128
    %v488 = vld [vmem:[%s487] sm:$0xff]
    %v489 = vld [vmem:[%s487 + $0x8] sm:$0xff]
    %v490 = vld [vmem:[%s487 + $0x10] sm:$0xff]
    %v491 = vld [vmem:[%s487 + $0x18] sm:$0xff]
    %v493 = vsel %vm207, %v486, 0
    %495 = vmatpush.msra.mxu0 0.0
    %496 = vmatpush.msra.mxu0 0.0
    %497 = vmatpush.msra.mxu0 0.0
    %498 = vmatpush.msra.mxu0 0.0
    %499 = vmatpush.msra.mxu0 0.0
    %500 = vmatpush.msra.mxu0 0.0
    %501 = vmatpush.msra.mxu0 0.0
    %502 = vmatpush.msra.mxu0 0.0
    %503 = vmatpush.msra.mxu0 0.0
    %504 = vmatpush.msra.mxu0 0.0
    %505 = vmatpush.msra.mxu0 0.0
    %506 = vmatpush.msra.mxu0 0.0
    %507 = vmatpush.msra.mxu0 %v491
    %508 = vmatpush.msra.mxu0 %v490
    %509 = vmatpush.msra.mxu0 %v489
    %510 = vmatpush.msra.mxu0 %v488
    %511 = vmatmul.f32.gmra.mxu0 %v493
    %v512 = vpop.f32.mrf.mxu0
    %v513 = vadd.f32 0.0, %v512
    %514 = vdwg.mxu0
    %v516 = vsel %vm207, %v471, 0
    %518 = vmatpush.msra.mxu0 0.0
    %519 = vmatpush.msra.mxu0 0.0
    %520 = vmatpush.msra.mxu0 0.0
    %521 = vmatpush.msra.mxu0 0.0
    %522 = vmatpush.msra.mxu0 0.0
    %523 = vmatpush.msra.mxu0 0.0
    %524 = vmatpush.msra.mxu0 0.0
    %525 = vmatpush.msra.mxu0 0.0
    %526 = vmatpush.msra.mxu0 0.0
    %527 = vmatpush.msra.mxu0 0.0
    %528 = vmatpush.msra.mxu0 0.0
    %529 = vmatpush.msra.mxu0 0.0
    %530 = vmatpush.msra.mxu0 %v481
    %531 = vmatpush.msra.mxu0 %v480
    %532 = vmatpush.msra.mxu0 %v479
    %533 = vmatpush.msra.mxu0 %v478
    %534 = vmatmul.f32.gmra.mxu0 %v516
    %v535 = vpop.f32.mrf.mxu0
    %v536 = vadd.f32 %v513, %v535
    %537 = vdwg.mxu0
    %s538 = scalar_lea.vmem [#allocation2], 160
    %v539 = vld [vmem:[%s538] sm:$0xff]
    %v540 = vld [vmem:[%s538 + $0x8] sm:$0xff]
    %v541 = vld [vmem:[%s538 + $0x10] sm:$0xff]
    %v542 = vld [vmem:[%s538 + $0x18] sm:$0xff]
    %v543 = vsel %vm207, %v484, 0
    %545 = vmatpush.msra.mxu0 0.0
    %546 = vmatpush.msra.mxu0 0.0
    %547 = vmatpush.msra.mxu0 0.0
    %548 = vmatpush.msra.mxu0 0.0
    %549 = vmatpush.msra.mxu0 0.0
    %550 = vmatpush.msra.mxu0 0.0
    %551 = vmatpush.msra.mxu0 0.0
    %552 = vmatpush.msra.mxu0 0.0
    %553 = vmatpush.msra.mxu0 0.0
    %554 = vmatpush.msra.mxu0 0.0
    %555 = vmatpush.msra.mxu0 0.0
    %556 = vmatpush.msra.mxu0 0.0
    %557 = vmatpush.msra.mxu0 %v542
    %558 = vmatpush.msra.mxu0 %v541
    %559 = vmatpush.msra.mxu0 %v540
    %560 = vmatpush.msra.mxu0 %v539
    %561 = vmatmul.f32.gmra.mxu0 %v543
    %v562 = vpop.f32.mrf.mxu0
    %v563 = vadd.f32 0.0, %v562
    %564 = vdwg.mxu0
    %v565 = vadd.f32 %v536, %v563
    %s566 = scalar_lea.vmem %s5, 1
    %v567 = vld [vmem:[%s566] sm:$0x1]
    %v569 = vperm.slane %v567, 0
    %v571 = vadd.f32 %v565, %v569
    %v572 = vmax.f32 %v571, 0.0
    %s573 = scalar_lea.vmem %s6, 96
    %v574 = vld [vmem:[%s573] sm:$0xff]
    %v575 = vld [vmem:[%s573 + $0x8] sm:$0xff]
    %v576 = vld [vmem:[%s573 + $0x10] sm:$0xff]
    %v577 = vld [vmem:[%s573 + $0x18] sm:$0xff]
    %v578 = vld [vmem:[%s573 + $0x20] sm:$0xff]
    %v579 = vld [vmem:[%s573 + $0x28] sm:$0xff]
    %v580 = vld [vmem:[%s573 + $0x30] sm:$0xff]
    %v581 = vld [vmem:[%s573 + $0x38] sm:$0xff]
    %v582 = vld [vmem:[%s573 + $0x40] sm:$0xff]
    %v583 = vld [vmem:[%s573 + $0x48] sm:$0xff]
    %v584 = vld [vmem:[%s573 + $0x50] sm:$0xff]
    %v585 = vld [vmem:[%s573 + $0x58] sm:$0xff]
    %s586 = scalar_lea.vmem %s7, 1
    %v587 = vld [vmem:[%s586] sm:$0x1]
    %v589 = vperm.slane %v587, 0
    %v592 = vsel %vm96, %v572, 0
    %594 = vmatpush.msra.mxu0 0.0
    %595 = vmatpush.msra.mxu0 0.0
    %596 = vmatpush.msra.mxu0 0.0
    %597 = vmatpush.msra.mxu0 0.0
    %598 = vmatpush.msra.mxu0 %v585
    %599 = vmatpush.msra.mxu0 %v584
    %600 = vmatpush.msra.mxu0 %v583
    %601 = vmatpush.msra.mxu0 %v582
    %602 = vmatpush.msra.mxu0 %v581
    %603 = vmatpush.msra.mxu0 %v580
    %604 = vmatpush.msra.mxu0 %v579
    %605 = vmatpush.msra.mxu0 %v578
    %606 = vmatpush.msra.mxu0 %v577
    %607 = vmatpush.msra.mxu0 %v576
    %608 = vmatpush.msra.mxu0 %v575
    %609 = vmatpush.msra.mxu0 %v574
    %610 = vmatmul.f32.gmra.mxu0 %v592
    %v611 = vpop.f32.mrf.mxu0
    %v612 = vadd.f32 %v589, %v611
    %613 = vdwg.mxu0
    %v614 = vmax.f32 %v612, 0.0
    %v615 = vmul.f32 %v327, %v614
    %v616 = vsel %vm207, %v615, 0.0
    %617 = vadd.xlane.f32.xlu0 %v616
    %v618 = vpop.xlane.xlu0 %617
    %vm619 = vcmask 7168
    %620 = vst.msk [vmem:[%s8] sm:$0xff] %vm619, %v618
    // Predicated region
    $region38: #{tpu_custom_call.1} parent=1 // pred_check
      _
    $region39: #{tpu_custom_call.1} parent=1 // pred_check_branch
      %622 = sbr.rel (0) target = $region41
    $region40: #{tpu_custom_call.1} parent=1 // pred_region
      _
    $region41: #{tpu_custom_call.1} parent=1 // pred_fallthru
      _
    // Predicated region
    $region42: #{tpu_custom_call.1} parent=1 // pred_check
      _
    $region43: #{tpu_custom_call.1} parent=1 // pred_check_branch
      %624 = sbr.rel (0) target = $region45
    $region44: #{tpu_custom_call.1} parent=1 // pred_region
      _
    $region45: #{tpu_custom_call.1} parent=1 // pred_fallthru
      _
    %625 = vsyncpa [#allocation3], 1

</llo_original>
